<compile_context>
chip_gen: v7x
topology: tpu7x:2x2x1
jax: 0.10.0
libtpu: 0.0.40
codegen_flags: <defaults>
</compile_context>

<pallas_src>
import functools

import jax
import jax.numpy as jnp
from jax.experimental import pallas as pl
from jax.experimental.pallas import tpu as pltpu

# ---- module "args" (deterministic, synthetic) ----
STATE_DIM = 16
HIDDEN_WIDTH = 32
ACTION_DIM = 4            # mean_layer outputs action_dim * 2 = 8
OUT_DIM = ACTION_DIM * 2
MAX_ACTION = 2.0
USE_TANH = 1              # activate_func = tanh
BATCH = 8

NUM_LAYERS = 5            # fc1..fc4 + mean_layer
WIDTH = 128               # padded lane width for every layer


def _round_up(x, m):
    return ((x + m - 1) // m) * m


def _actor_kernel(s_ref, w_ref, b_ref, out_ref, *, bf16_act):
    """Whole MLP forward on one batch tile.

    s_ref:   (TILE_B, STATE_DIM)  unpadded input tile (VMEM)
    w_ref:   (5, 128, 128)        zero-padded, stacked weights (VMEM-resident)
    b_ref:   (5, 1, 128)          zero-padded, stacked biases   (VMEM-resident)
    out_ref: (TILE_B, 128)        lane-dense output tile (cols >= OUT_DIM are junk)
    """
    act = jnp.tanh if USE_TANH else jax.nn.relu

    def activate(z):
        if bf16_act:
            # Large-batch EUP option for v6e/v7x only (bf16 EUP); keep f32 on v5e.
            return act(z.astype(jnp.bfloat16)).astype(jnp.float32)
        return act(z)

    # Layer 1: only the first STATE_DIM sublanes of the padded weight are real.
    x = activate(
        jnp.dot(s_ref[...], w_ref[0, :STATE_DIM, :],
                preferred_element_type=jnp.float32) + b_ref[0])

    # Layers 2..4 (static unroll; first-axis Ref indexing is free).
    for l in range(1, NUM_LAYERS - 1):
        x = activate(
            jnp.dot(x, w_ref[l], preferred_element_type=jnp.float32) + b_ref[l])

    # Head: max_action * (tanh(z) + 1) / 2, with 0.5*max_action pre-folded.
    z = jnp.dot(x, w_ref[NUM_LAYERS - 1],
                preferred_element_type=jnp.float32) + b_ref[NUM_LAYERS - 1]
    if bf16_act:
        t = jnp.tanh(z.astype(jnp.bfloat16)).astype(jnp.float32)
    else:
        t = jnp.tanh(z)
    out_ref[...] = ((0.5 * MAX_ACTION) * (t + 1.0)).astype(out_ref.dtype)


def actor_continue_forward(s, w_stack, b_stack, *, tile_b=2048, bf16_act=False):
    """Pad batch, launch one batch-tiled pallas_call, slice the real output."""
    batch = s.shape[0]
    assert s.shape[1] == STATE_DIM
    n_layers, width, _ = w_stack.shape

    # Batch tile: multiple of 8 sublanes, capped at tile_b; guarantee >= 2 grid
    # steps whenever there are >= 16 rows so the "parallel" axis can shard across
    # both TensorCores on v7x (no-op on single-TC v5e/v6e).
    tile_b = max(8, _round_up(tile_b, 8))
    b8 = _round_up(batch, 8)
    if b8 >= 16:
        tb = min(tile_b, _round_up(pl.cdiv(b8, 2), 8))
    else:
        tb = b8
    b_pad = _round_up(batch, tb)
    s_p = jnp.pad(s, ((0, b_pad - batch), (0, 0))) if b_pad != batch else s

    grid = (b_pad // tb,)

    cost = pl.CostEstimate(
        flops=2 * batch * (STATE_DIM * HIDDEN_WIDTH
                           + 3 * HIDDEN_WIDTH * HIDDEN_WIDTH
                           + HIDDEN_WIDTH * OUT_DIM),
        transcendentals=batch * (4 * HIDDEN_WIDTH + OUT_DIM),
        bytes_accessed=4 * (s.size + w_stack.size + b_stack.size + batch * OUT_DIM),
    )

    kernel = functools.partial(_actor_kernel, bf16_act=bf16_act)

    out_padded = pl.pallas_call(
        kernel,
        out_shape=jax.ShapeDtypeStruct((b_pad, width), jnp.float32),
        grid=grid,
        in_specs=[
            pl.BlockSpec((tb, STATE_DIM), lambda i: (i, 0)),                  # s tile
            pl.BlockSpec((n_layers, width, width), lambda i: (0, 0, 0)),      # weights (resident)
            pl.BlockSpec((n_layers, 1, width), lambda i: (0, 0, 0)),          # biases  (resident)
        ],
        out_specs=pl.BlockSpec((tb, width), lambda i: (i, 0)),
        compiler_params=pltpu.CompilerParams(dimension_semantics=("parallel",)),
        cost_estimate=cost,
    )(s_p, w_stack, b_stack)

    return out_padded[:batch, :OUT_DIM]


def init_params(key):
    """Deterministic orthogonal init (matching orthogonal_init in the reference):
    orthogonal weights (gain=1.0 for fc1..fc4, gain=0.01 for mean_layer), zero
    biases.  Returns per-layer (unpadded) weights/biases for the JAX reference."""
    ortho = jax.nn.initializers.orthogonal
    ks = jax.random.split(key, NUM_LAYERS)
    dims = [
        (STATE_DIM, HIDDEN_WIDTH),
        (HIDDEN_WIDTH, HIDDEN_WIDTH),
        (HIDDEN_WIDTH, HIDDEN_WIDTH),
        (HIDDEN_WIDTH, HIDDEN_WIDTH),
        (HIDDEN_WIDTH, OUT_DIM),
    ]
    gains = [1.0, 1.0, 1.0, 1.0, 0.01]
    ws, bs = [], []
    for k, (din, dout), g in zip(ks, dims, gains):
        ws.append(ortho(scale=g)(k, (din, dout), jnp.float32))
        bs.append(jnp.zeros((dout,), jnp.float32))
    return ws, bs


def pack_params(ws, bs, width=WIDTH):
    """Zero-pad every layer to (width, width) / (1, width) and stack.
    Padded weight rows/cols are zero so the math is exact; the extra output
    columns of the mean layer are sliced away in the wrapper."""
    w_stack = jnp.stack([
        jnp.pad(w, ((0, width - w.shape[0]), (0, width - w.shape[1]))) for w in ws
    ])
    b_stack = jnp.stack([
        jnp.pad(b, (0, width - b.shape[0]))[None, :] for b in bs
    ])
    return w_stack, b_stack


def actor_continue_ref(s, ws, bs):
    """Pure-JAX reference for correctness checking (unpadded params)."""
    act = jnp.tanh if USE_TANH else jax.nn.relu
    x = s
    for w, b in zip(ws[:-1], bs[:-1]):
        x = act(x @ w + b)
    return MAX_ACTION * (jnp.tanh(x @ ws[-1] + bs[-1]) + 1.0) / 2.0


if __name__ == "__main__":
    key = jax.random.PRNGKey(0)
    k_s, k_p = jax.random.split(key)

    s = jax.random.normal(k_s, (BATCH, STATE_DIM), dtype=jnp.float32)
    ws, bs = init_params(k_p)
    w_stack, b_stack = pack_params(ws, bs)

    out = actor_continue_forward(s, w_stack, b_stack)
    out = jax.block_until_ready(out)

    ref = actor_continue_ref(s, ws, bs)
    assert out.shape == (BATCH, OUT_DIM), out.shape
    assert jnp.allclose(out, ref, atol=1e-5, rtol=1e-5), "mismatch vs JAX reference"

    # TODO(synk): get_dist()'s Normal(mean, exp(log_std)) distribution object has
    # no Pallas equivalent; only forward() is kernelized.
    print("KERNEL_OK")
</pallas_src>

<mosaic_0001>
module attributes {stable_mosaic.version = 11 : i64} {
  func.func @_actor_kernel(%arg0: i32, %arg1: memref<8x16xf32, #tpu.memory_space<vmem>>, %arg2: memref<5x128x128xf32, #tpu.memory_space<vmem>>, %arg3: memref<5x1x128xf32, #tpu.memory_space<vmem>>, %arg4: memref<8x128xf32, #tpu.memory_space<vmem>>) attributes {dimension_semantics = [#tpu.dimension_semantics<parallel>], iteration_bounds = array<i64: 1>, scalar_prefetch = 0 : i64, scratch_operands = 0 : i64, tpu.core_type = #tpu.core_type<tc>, window_params = [{transform_indices = @transform_0, window_bounds = array<i64: 8, 16>}, {pipeline_mode = #tpu.pipeline_mode<synchronous>, transform_indices = @transform_1, window_bounds = array<i64: 5, 128, 128>}, {pipeline_mode = #tpu.pipeline_mode<synchronous>, transform_indices = @transform_2, window_bounds = array<i64: 5, 1, 128>}, {transform_indices = @transform_3, window_bounds = array<i64: 8, 128>}]} {
    %c0 = arith.constant 0 : index
    %c0_0 = arith.constant 0 : index
    %0 = vector.load %arg1[%c0, %c0_0] : memref<8x16xf32, #tpu.memory_space<vmem>>, vector<8x16xf32>
    %c0_1 = arith.constant 0 : index
    %c0_2 = arith.constant 0 : index
    %c0_3 = arith.constant 0 : index
    %1 = vector.load %arg2[%c0_1, %c0_2, %c0_3] : memref<5x128x128xf32, #tpu.memory_space<vmem>>, vector<1x16x128xf32>
    %2 = vector.shape_cast %1 : vector<1x16x128xf32> to vector<16x128xf32>
    %cst = arith.constant dense<0.000000e+00> : vector<8x128xf32>
    %3 = tpu.matmul %0, %2, %cst {dimension_numbers = #tpu.dot_dimension_numbers<[1], [0], [0], [1], [0, 0, 1, 1], [], []>} : vector<8x16xf32>, vector<16x128xf32>, vector<8x128xf32> -> vector<8x128xf32>
    %c0_4 = arith.constant 0 : index
    %c0_5 = arith.constant 0 : index
    %c0_6 = arith.constant 0 : index
    %4 = vector.load %arg3[%c0_4, %c0_5, %c0_6] : memref<5x1x128xf32, #tpu.memory_space<vmem>>, vector<1x1x128xf32>
    %5 = vector.shape_cast %4 : vector<1x1x128xf32> to vector<1x128xf32>
    %6 = vector.broadcast %5 : vector<1x128xf32> to vector<8x128xf32>
    %7 = arith.addf %3, %6 : vector<8x128xf32>
    %8 = math.tanh %7 : vector<8x128xf32>
    %c1 = arith.constant 1 : index
    %c0_7 = arith.constant 0 : index
    %c0_8 = arith.constant 0 : index
    %9 = vector.load %arg2[%c1, %c0_7, %c0_8] : memref<5x128x128xf32, #tpu.memory_space<vmem>>, vector<1x128x128xf32>
    %10 = vector.shape_cast %9 : vector<1x128x128xf32> to vector<128x128xf32>
    %cst_9 = arith.constant dense<0.000000e+00> : vector<8x128xf32>
    %11 = tpu.matmul %8, %10, %cst_9 {dimension_numbers = #tpu.dot_dimension_numbers<[1], [0], [0], [1], [0, 0, 1, 1], [], []>} : vector<8x128xf32>, vector<128x128xf32>, vector<8x128xf32> -> vector<8x128xf32>
    %c1_10 = arith.constant 1 : index
    %c0_11 = arith.constant 0 : index
    %c0_12 = arith.constant 0 : index
    %12 = vector.load %arg3[%c1_10, %c0_11, %c0_12] : memref<5x1x128xf32, #tpu.memory_space<vmem>>, vector<1x1x128xf32>
    %13 = vector.shape_cast %12 : vector<1x1x128xf32> to vector<1x128xf32>
    %14 = vector.broadcast %13 : vector<1x128xf32> to vector<8x128xf32>
    %15 = arith.addf %11, %14 : vector<8x128xf32>
    %16 = math.tanh %15 : vector<8x128xf32>
    %c2 = arith.constant 2 : index
    %c0_13 = arith.constant 0 : index
    %c0_14 = arith.constant 0 : index
    %17 = vector.load %arg2[%c2, %c0_13, %c0_14] : memref<5x128x128xf32, #tpu.memory_space<vmem>>, vector<1x128x128xf32>
    %18 = vector.shape_cast %17 : vector<1x128x128xf32> to vector<128x128xf32>
    %cst_15 = arith.constant dense<0.000000e+00> : vector<8x128xf32>
    %19 = tpu.matmul %16, %18, %cst_15 {dimension_numbers = #tpu.dot_dimension_numbers<[1], [0], [0], [1], [0, 0, 1, 1], [], []>} : vector<8x128xf32>, vector<128x128xf32>, vector<8x128xf32> -> vector<8x128xf32>
    %c2_16 = arith.constant 2 : index
    %c0_17 = arith.constant 0 : index
    %c0_18 = arith.constant 0 : index
    %20 = vector.load %arg3[%c2_16, %c0_17, %c0_18] : memref<5x1x128xf32, #tpu.memory_space<vmem>>, vector<1x1x128xf32>
    %21 = vector.shape_cast %20 : vector<1x1x128xf32> to vector<1x128xf32>
    %22 = vector.broadcast %21 : vector<1x128xf32> to vector<8x128xf32>
    %23 = arith.addf %19, %22 : vector<8x128xf32>
    %24 = math.tanh %23 : vector<8x128xf32>
    %c3 = arith.constant 3 : index
    %c0_19 = arith.constant 0 : index
    %c0_20 = arith.constant 0 : index
    %25 = vector.load %arg2[%c3, %c0_19, %c0_20] : memref<5x128x128xf32, #tpu.memory_space<vmem>>, vector<1x128x128xf32>
    %26 = vector.shape_cast %25 : vector<1x128x128xf32> to vector<128x128xf32>
    %cst_21 = arith.constant dense<0.000000e+00> : vector<8x128xf32>
    %27 = tpu.matmul %24, %26, %cst_21 {dimension_numbers = #tpu.dot_dimension_numbers<[1], [0], [0], [1], [0, 0, 1, 1], [], []>} : vector<8x128xf32>, vector<128x128xf32>, vector<8x128xf32> -> vector<8x128xf32>
    %c3_22 = arith.constant 3 : index
    %c0_23 = arith.constant 0 : index
    %c0_24 = arith.constant 0 : index
    %28 = vector.load %arg3[%c3_22, %c0_23, %c0_24] : memref<5x1x128xf32, #tpu.memory_space<vmem>>, vector<1x1x128xf32>
    %29 = vector.shape_cast %28 : vector<1x1x128xf32> to vector<1x128xf32>
    %30 = vector.broadcast %29 : vector<1x128xf32> to vector<8x128xf32>
    %31 = arith.addf %27, %30 : vector<8x128xf32>
    %32 = math.tanh %31 : vector<8x128xf32>
    %c4 = arith.constant 4 : index
    %c0_25 = arith.constant 0 : index
    %c0_26 = arith.constant 0 : index
    %33 = vector.load %arg2[%c4, %c0_25, %c0_26] : memref<5x128x128xf32, #tpu.memory_space<vmem>>, vector<1x128x128xf32>
    %34 = vector.shape_cast %33 : vector<1x128x128xf32> to vector<128x128xf32>
    %cst_27 = arith.constant dense<0.000000e+00> : vector<8x128xf32>
    %35 = tpu.matmul %32, %34, %cst_27 {dimension_numbers = #tpu.dot_dimension_numbers<[1], [0], [0], [1], [0, 0, 1, 1], [], []>} : vector<8x128xf32>, vector<128x128xf32>, vector<8x128xf32> -> vector<8x128xf32>
    %c4_28 = arith.constant 4 : index
    %c0_29 = arith.constant 0 : index
    %c0_30 = arith.constant 0 : index
    %36 = vector.load %arg3[%c4_28, %c0_29, %c0_30] : memref<5x1x128xf32, #tpu.memory_space<vmem>>, vector<1x1x128xf32>
    %37 = vector.shape_cast %36 : vector<1x1x128xf32> to vector<1x128xf32>
    %38 = vector.broadcast %37 : vector<1x128xf32> to vector<8x128xf32>
    %39 = arith.addf %35, %38 : vector<8x128xf32>
    %40 = math.tanh %39 : vector<8x128xf32>
    %cst_31 = arith.constant 1.000000e+00 : f32
    %41 = vector.broadcast %cst_31 : f32 to vector<8x128xf32>
    %42 = arith.addf %40, %41 : vector<8x128xf32>
    %cst_32 = arith.constant 1.000000e+00 : f32
    %43 = vector.broadcast %cst_32 : f32 to vector<8x128xf32>
    %44 = arith.mulf %43, %42 : vector<8x128xf32>
    %c0_33 = arith.constant 0 : index
    %c0_34 = arith.constant 0 : index
    %45 = vector.load %arg4[%c0_33, %c0_34] : memref<8x128xf32, #tpu.memory_space<vmem>>, vector<8x128xf32>
    tpu.vector_store %arg4[%c0_33, %c0_34], %44 {strides = array<i32>} : memref<8x128xf32, #tpu.memory_space<vmem>>, vector<8x128xf32>,
    return
  }
  func.func @transform_0(%arg0: i32) -> (i32, i32) {
    %c0_i32 = arith.constant 0 : i32
    %c0_i32_0 = arith.constant 0 : i32
    return %arg0, %c0_i32 : i32, i32
  }
  func.func @transform_1(%arg0: i32) -> (i32, i32, i32) {
    %c0_i32 = arith.constant 0 : i32
    %c0_i32_0 = arith.constant 0 : i32
    %c0_i32_1 = arith.constant 0 : i32
    %c0_i32_2 = arith.constant 0 : i32
    return %c0_i32, %c0_i32_0, %c0_i32_1 : i32, i32, i32
  }
  func.func @transform_2(%arg0: i32) -> (i32, i32, i32) {
    %c0_i32 = arith.constant 0 : i32
    %c0_i32_0 = arith.constant 0 : i32
    %c0_i32_1 = arith.constant 0 : i32
    %c0_i32_2 = arith.constant 0 : i32
    return %c0_i32, %c0_i32_0, %c0_i32_1 : i32, i32, i32
  }
  func.func @transform_3(%arg0: i32) -> (i32, i32) {
    %c0_i32 = arith.constant 0 : i32
    %c0_i32_0 = arith.constant 0 : i32
    return %arg0, %c0_i32 : i32, i32
  }
}

</mosaic_0001>

<llo_original>
// kernel: tpu_custom_call.1
$region0: #{tpu_custom_call.1}
  #allocation0 [shape = 'u32[]', space=smem, size = 0x4, offset = 0x4, fixed_abs, tag = 'smem constant byte address 0x4 - core index']
  #allocation1 [shape = 'u32[144,128]{1,0:T(1,128)}', space=vmem, size = 0x12000, scoped, tag = 'internal scratch']
  %s0 = inlined_call_operand.hbm [shape: f32[8,16], index: 0, kind: input, shape index: {}]
  %s1 = inlined_call_operand.hbm [shape: f32[5,128,128], index: 1, kind: input, shape index: {}]
  %s2 = inlined_call_operand.vmem [shape: f32[5,1,128], index: 2, kind: input, shape index: {}]
  %s3 = inlined_call_operand.hbm [shape: f32[8,128], index: 3, kind: output, shape index: {}]
  %s4 = sld [smem:[#allocation0]]
  $region30: #{tpu_custom_call.1} parent=0
    _
  %s6 = ssub.s32 1, %s4
  %s7 = scalar_select 0, %s6, %s4
  $region1: #{tpu_custom_call.1} parent=0
    #allocation2 [shape = 'u8[4096]{0}', space=vmem, size = 0x1000, scoped, tag = 'input window, operand 0, single buffered']
    #allocation3 [shape = 's32[1]{0}', space=sflag, size = 0x4, scoped, tag = 'scoped memory for tpu_custom_call.1']
    #allocation4 [shape = 's32[1]{0}', space=sflag, size = 0x4, scoped, tag = 'scoped memory for tpu_custom_call.1']
    #allocation5 [shape = 'u8[327680]{0}', space=vmem, size = 0x50000, scoped, tag = 'input window, operand 1, single buffered']
    #allocation6 [shape = 's32[1]{0}', space=sflag, size = 0x4, scoped, tag = 'scoped memory for tpu_custom_call.1']
    #allocation7 [shape = 'u8[4096]{0}', space=vmem, size = 0x1000, scoped, tag = 'output window, operand 0, single buffered']
    %8 = vsyncpa [#allocation3], 0
    %9 = vsyncpa [#allocation6], 0
    %10 = vsyncpa [#allocation4], 0
    // Predicated region
    $region2: #{tpu_custom_call.1} parent=1 // pred_check
      _
    $region3: #{tpu_custom_call.1} parent=1 // pred_check_branch
      %12 = sbr.rel (0) target = $region5
    $region4: #{tpu_custom_call.1} parent=1 // pred_region
      %s14 = ssub.s32 128, 128
      %15 = vsyncadd [#allocation3], %s14
      %s17 = sshll.u32 [#allocation2], 4
      %s18 = int_to_ptr.vmem [resolvable:$true] %s17
      %20 = dma.hbm_to_vmem [thread:$0]  %s0, 128, %s18, [#allocation3]
    $region5: #{tpu_custom_call.1} parent=1 // pred_fallthru
      _
    // Predicated region
    $region6: #{tpu_custom_call.1} parent=1 // pred_check
      _
    $region7: #{tpu_custom_call.1} parent=1 // pred_check_branch
      %22 = sbr.rel (0) target = $region9
    $region8: #{tpu_custom_call.1} parent=1 // pred_region
      %s24 = ssub.s32 10240, 10240
      %25 = vsyncadd [#allocation6], %s24
      %s26 = sshll.u32 [#allocation5], 4
      %s27 = int_to_ptr.vmem [resolvable:$true] %s26
      %32 = dma.hbm_to_vmem [thread:$0]  %s1, 10240, %s27, [#allocation6], 128, 128, 8
    $region9: #{tpu_custom_call.1} parent=1 // pred_fallthru
      _
    // Predicated region
    $region10: #{tpu_custom_call.1} parent=1 // pred_check
      _
    $region11: #{tpu_custom_call.1} parent=1 // pred_check_branch
      %34 = sbr.rel (0) target = $region13
    $region12: #{tpu_custom_call.1} parent=1 // pred_region
      _
    $region13: #{tpu_custom_call.1} parent=1 // pred_fallthru
      _
    // Predicated region
    $region14: #{tpu_custom_call.1} parent=1 // pred_check
      _
    $region15: #{tpu_custom_call.1} parent=1 // pred_check_branch
      %36 = sbr.rel (0) target = $region17
    $region16: #{tpu_custom_call.1} parent=1 // pred_region
      %37 = dma.done [#allocation3], 128
    $region17: #{tpu_custom_call.1} parent=1 // pred_fallthru
      _
    // Predicated region
    $region18: #{tpu_custom_call.1} parent=1 // pred_check
      _
    $region19: #{tpu_custom_call.1} parent=1 // pred_check_branch
      %39 = sbr.rel (0) target = $region21
    $region20: #{tpu_custom_call.1} parent=1 // pred_region
      %40 = dma.done [#allocation6], 10240
    $region21: #{tpu_custom_call.1} parent=1 // pred_fallthru
      _
    %v41 = vld [vmem:[#allocation2] sm:$0xff]
    %v42 = vld [vmem:[#allocation5] sm:$0xff]
    %v43 = vld [vmem:[#allocation5 + $0x8] sm:$0xff]
    %v44 = vld [vmem:[%s2] sm:$0x1]
    %v46 = vlaneseq
    %v47 = vshrl.u32 %v46, 7
    %v48 = vsub.s32 0, %v47
    %v49 = vrot.slane %v44, %v48
    %vm51 = vcmask 130048
    %v53 = vsel %vm51, %v41, 0
    %55 = vmatprep.subr.mxu0 0.0
    %56 = vmatpush1.msra.mxu0 %v42
    %57 = vmatprep.subr.mxu0 0.0
    %58 = vmatpush1.msra.mxu0 %v43
    %59 = vmatprep.subr.mxu0 0.0
    %60 = vmatpush1.msra.mxu0 0.0
    %61 = vmatprep.subr.mxu0 0.0
    %62 = vmatpush1.msra.mxu0 0.0
    %63 = vmatprep.subr.mxu0 0.0
    %64 = vmatpush1.msra.mxu0 0.0
    %65 = vmatprep.subr.mxu0 0.0
    %66 = vmatpush1.msra.mxu0 0.0
    %67 = vmatprep.subr.mxu0 0.0
    %68 = vmatpush1.msra.mxu0 0.0
    %69 = vmatprep.subr.mxu0 0.0
    %70 = vmatpush1.msra.mxu0 0.0
    %71 = vmatprep.subr.mxu0 0.0
    %72 = vmatpush1.msra.mxu0 0.0
    %73 = vmatprep.subr.mxu0 0.0
    %74 = vmatpush1.msra.mxu0 0.0
    %75 = vmatprep.subr.mxu0 0.0
    %76 = vmatpush1.msra.mxu0 0.0
    %77 = vmatprep.subr.mxu0 0.0
    %78 = vmatpush1.msra.mxu0 0.0
    %79 = vmatprep.subr.mxu0 0.0
    %80 = vmatpush1.msra.mxu0 0.0
    %81 = vmatprep.subr.mxu0 0.0
    %82 = vmatpush1.msra.mxu0 0.0
    %83 = vmatprep.subr.mxu0 0.0
    %84 = vmatpush1.msra.mxu0 0.0
    %85 = vmatprep.subr.mxu0 0.0
    %86 = vmatpush1.msra.mxu0 0.0
    %87 = vmatprep.subr.mxu0 0.0
    %88 = vmatpush1.msra.mxu0 0.0
    %89 = vmatprep.subr.mxu0 0.0
    %90 = vmatpush1.msra.mxu0 0.0
    %91 = vmatprep.subr.mxu0 0.0
    %92 = vmatpush1.msra.mxu0 0.0
    %93 = vmatprep.subr.mxu0 0.0
    %94 = vmatpush1.msra.mxu0 0.0
    %95 = vmatprep.subr.mxu0 0.0
    %96 = vmatpush1.msra.mxu0 0.0
    %97 = vmatprep.subr.mxu0 0.0
    %98 = vmatpush1.msra.mxu0 0.0
    %99 = vmatprep.subr.mxu0 0.0
    %100 = vmatpush1.msra.mxu0 0.0
    %101 = vmatprep.subr.mxu0 0.0
    %102 = vmatpush1.msra.mxu0 0.0
    %103 = vmatprep.subr.mxu0 0.0
    %104 = vmatpush1.msra.mxu0 0.0
    %105 = vmatprep.subr.mxu0 0.0
    %106 = vmatpush1.msra.mxu0 0.0
    %107 = vmatprep.subr.mxu0 0.0
    %108 = vmatpush1.msra.mxu0 0.0
    %109 = vmatprep.subr.mxu0 0.0
    %110 = vmatpush1.msra.mxu0 0.0
    %111 = vmatprep.subr.mxu0 0.0
    %112 = vmatpush1.msra.mxu0 0.0
    %113 = vmatprep.subr.mxu0 0.0
    %114 = vmatpush1.msra.mxu0 0.0
    %115 = vmatprep.subr.mxu0 0.0
    %116 = vmatpush1.msra.mxu0 0.0
    %117 = vmatprep.subr.mxu0 0.0
    %118 = vmatpush1.msra.mxu0 0.0
    %119 = vmatprep.mubr.f32.mxu0 0.0
    %120 = vmatmul.mubr.f32.gmra.mrb[0].mxu0 %v53
    %v121 = vpop.f32.mrb[0].mxu0
    %v122 = vadd.f32 %v49, %v121
    %v123 = vpop.f32.mrb[0].mxu0
    %124 = vdwg.mxu0
    %v125 = vtanh.pop %v122
    %s126 = scalar_lea.vmem [#allocation5], 128
    %v127 = vld [vmem:[%s126] sm:$0xff]
    %v128 = vld [vmem:[%s126 + $0x8] sm:$0xff]
    %v129 = vld [vmem:[%s126 + $0x10] sm:$0xff]
    %v130 = vld [vmem:[%s126 + $0x18] sm:$0xff]
    %v131 = vld [vmem:[%s126 + $0x20] sm:$0xff]
    %v132 = vld [vmem:[%s126 + $0x28] sm:$0xff]
    %v133 = vld [vmem:[%s126 + $0x30] sm:$0xff]
    %v134 = vld [vmem:[%s126 + $0x38] sm:$0xff]
    %v135 = vld [vmem:[%s126 + $0x40] sm:$0xff]
    %v136 = vld [vmem:[%s126 + $0x48] sm:$0xff]
    %v137 = vld [vmem:[%s126 + $0x50] sm:$0xff]
    %v138 = vld [vmem:[%s126 + $0x58] sm:$0xff]
    %v139 = vld [vmem:[%s126 + $0x60] sm:$0xff]
    %v140 = vld [vmem:[%s126 + $0x68] sm:$0xff]
    %v141 = vld [vmem:[%s126 + $0x70] sm:$0xff]
    %v142 = vld [vmem:[%s126 + $0x78] sm:$0xff]
    %s143 = scalar_lea.vmem %s2, 1
    %v144 = vld [vmem:[%s143] sm:$0x1]
    %v146 = vlaneseq
    %v147 = vshrl.u32 %v146, 7
    %v148 = vsub.s32 0, %v147
    %v149 = vrot.slane %v144, %v148
    %151 = vmatprep.subr.mxu0 0.0
    %152 = vmatpush1.msra.mxu0 %v127
    %153 = vmatprep.subr.mxu0 0.0
    %154 = vmatpush1.msra.mxu0 %v128
    %155 = vmatprep.subr.mxu0 0.0
    %156 = vmatpush1.msra.mxu0 %v129
    %157 = vmatprep.subr.mxu0 0.0
    %158 = vmatpush1.msra.mxu0 %v130
    %159 = vmatprep.subr.mxu0 0.0
    %160 = vmatpush1.msra.mxu0 %v131
    %161 = vmatprep.subr.mxu0 0.0
    %162 = vmatpush1.msra.mxu0 %v132
    %163 = vmatprep.subr.mxu0 0.0
    %164 = vmatpush1.msra.mxu0 %v133
    %165 = vmatprep.subr.mxu0 0.0
    %166 = vmatpush1.msra.mxu0 %v134
    %167 = vmatprep.subr.mxu0 0.0
    %168 = vmatpush1.msra.mxu0 %v135
    %169 = vmatprep.subr.mxu0 0.0
    %170 = vmatpush1.msra.mxu0 %v136
    %171 = vmatprep.subr.mxu0 0.0
    %172 = vmatpush1.msra.mxu0 %v137
    %173 = vmatprep.subr.mxu0 0.0
    %174 = vmatpush1.msra.mxu0 %v138
    %175 = vmatprep.subr.mxu0 0.0
    %176 = vmatpush1.msra.mxu0 %v139
    %177 = vmatprep.subr.mxu0 0.0
    %178 = vmatpush1.msra.mxu0 %v140
    %179 = vmatprep.subr.mxu0 0.0
    %180 = vmatpush1.msra.mxu0 %v141
    %181 = vmatprep.subr.mxu0 0.0
    %182 = vmatpush1.msra.mxu0 %v142
    %183 = vmatprep.subr.mxu0 0.0
    %184 = vmatpush1.msra.mxu0 0.0
    %185 = vmatprep.subr.mxu0 0.0
    %186 = vmatpush1.msra.mxu0 0.0
    %187 = vmatprep.subr.mxu0 0.0
    %188 = vmatpush1.msra.mxu0 0.0
    %189 = vmatprep.subr.mxu0 0.0
    %190 = vmatpush1.msra.mxu0 0.0
    %191 = vmatprep.subr.mxu0 0.0
    %192 = vmatpush1.msra.mxu0 0.0
    %193 = vmatprep.subr.mxu0 0.0
    %194 = vmatpush1.msra.mxu0 0.0
    %195 = vmatprep.subr.mxu0 0.0
    %196 = vmatpush1.msra.mxu0 0.0
    %197 = vmatprep.subr.mxu0 0.0
    %198 = vmatpush1.msra.mxu0 0.0
    %199 = vmatprep.subr.mxu0 0.0
    %200 = vmatpush1.msra.mxu0 0.0
    %201 = vmatprep.subr.mxu0 0.0
    %202 = vmatpush1.msra.mxu0 0.0
    %203 = vmatprep.subr.mxu0 0.0
    %204 = vmatpush1.msra.mxu0 0.0
    %205 = vmatprep.subr.mxu0 0.0
    %206 = vmatpush1.msra.mxu0 0.0
    %207 = vmatprep.subr.mxu0 0.0
    %208 = vmatpush1.msra.mxu0 0.0
    %209 = vmatprep.subr.mxu0 0.0
    %210 = vmatpush1.msra.mxu0 0.0
    %211 = vmatprep.subr.mxu0 0.0
    %212 = vmatpush1.msra.mxu0 0.0
    %213 = vmatprep.subr.mxu0 0.0
    %214 = vmatpush1.msra.mxu0 0.0
    %215 = vmatprep.mubr.f32.mxu0 0.0
    %216 = vmatmul.mubr.f32.gmra.mrb[0].mxu0 %v125
    %v217 = vpop.f32.mrb[0].mxu0
    %v218 = vadd.f32 %v149, %v217
    %v219 = vpop.f32.mrb[0].mxu0
    %220 = vdwg.mxu0
    %v221 = vtanh.pop %v218
    %s222 = scalar_lea.vmem [#allocation5], 256
    %v223 = vld [vmem:[%s222] sm:$0xff]
    %v224 = vld [vmem:[%s222 + $0x8] sm:$0xff]
    %v225 = vld [vmem:[%s222 + $0x10] sm:$0xff]
    %v226 = vld [vmem:[%s222 + $0x18] sm:$0xff]
    %v227 = vld [vmem:[%s222 + $0x20] sm:$0xff]
    %v228 = vld [vmem:[%s222 + $0x28] sm:$0xff]
    %v229 = vld [vmem:[%s222 + $0x30] sm:$0xff]
    %v230 = vld [vmem:[%s222 + $0x38] sm:$0xff]
    %v231 = vld [vmem:[%s222 + $0x40] sm:$0xff]
    %v232 = vld [vmem:[%s222 + $0x48] sm:$0xff]
    %v233 = vld [vmem:[%s222 + $0x50] sm:$0xff]
    %v234 = vld [vmem:[%s222 + $0x58] sm:$0xff]
    %v235 = vld [vmem:[%s222 + $0x60] sm:$0xff]
    %v236 = vld [vmem:[%s222 + $0x68] sm:$0xff]
    %v237 = vld [vmem:[%s222 + $0x70] sm:$0xff]
    %v238 = vld [vmem:[%s222 + $0x78] sm:$0xff]
    %s239 = scalar_lea.vmem %s2, 2
    %v240 = vld [vmem:[%s239] sm:$0x1]
    %v242 = vlaneseq
    %v243 = vshrl.u32 %v242, 7
    %v244 = vsub.s32 0, %v243
    %v245 = vrot.slane %v240, %v244
    %247 = vmatprep.subr.mxu0 0.0
    %248 = vmatpush1.msra.mxu0 %v223
    %249 = vmatprep.subr.mxu0 0.0
    %250 = vmatpush1.msra.mxu0 %v224
    %251 = vmatprep.subr.mxu0 0.0
    %252 = vmatpush1.msra.mxu0 %v225
    %253 = vmatprep.subr.mxu0 0.0
    %254 = vmatpush1.msra.mxu0 %v226
    %255 = vmatprep.subr.mxu0 0.0
    %256 = vmatpush1.msra.mxu0 %v227
    %257 = vmatprep.subr.mxu0 0.0
    %258 = vmatpush1.msra.mxu0 %v228
    %259 = vmatprep.subr.mxu0 0.0
    %260 = vmatpush1.msra.mxu0 %v229
    %261 = vmatprep.subr.mxu0 0.0
    %262 = vmatpush1.msra.mxu0 %v230
    %263 = vmatprep.subr.mxu0 0.0
    %264 = vmatpush1.msra.mxu0 %v231
    %265 = vmatprep.subr.mxu0 0.0
    %266 = vmatpush1.msra.mxu0 %v232
    %267 = vmatprep.subr.mxu0 0.0
    %268 = vmatpush1.msra.mxu0 %v233
    %269 = vmatprep.subr.mxu0 0.0
    %270 = vmatpush1.msra.mxu0 %v234
    %271 = vmatprep.subr.mxu0 0.0
    %272 = vmatpush1.msra.mxu0 %v235
    %273 = vmatprep.subr.mxu0 0.0
    %274 = vmatpush1.msra.mxu0 %v236
    %275 = vmatprep.subr.mxu0 0.0
    %276 = vmatpush1.msra.mxu0 %v237
    %277 = vmatprep.subr.mxu0 0.0
    %278 = vmatpush1.msra.mxu0 %v238
    %279 = vmatprep.subr.mxu0 0.0
    %280 = vmatpush1.msra.mxu0 0.0
    %281 = vmatprep.subr.mxu0 0.0
    %282 = vmatpush1.msra.mxu0 0.0
    %283 = vmatprep.subr.mxu0 0.0
    %284 = vmatpush1.msra.mxu0 0.0
    %285 = vmatprep.subr.mxu0 0.0
    %286 = vmatpush1.msra.mxu0 0.0
    %287 = vmatprep.subr.mxu0 0.0
    %288 = vmatpush1.msra.mxu0 0.0
    %289 = vmatprep.subr.mxu0 0.0
    %290 = vmatpush1.msra.mxu0 0.0
    %291 = vmatprep.subr.mxu0 0.0
    %292 = vmatpush1.msra.mxu0 0.0
    %293 = vmatprep.subr.mxu0 0.0
    %294 = vmatpush1.msra.mxu0 0.0
    %295 = vmatprep.subr.mxu0 0.0
    %296 = vmatpush1.msra.mxu0 0.0
    %297 = vmatprep.subr.mxu0 0.0
    %298 = vmatpush1.msra.mxu0 0.0
    %299 = vmatprep.subr.mxu0 0.0
    %300 = vmatpush1.msra.mxu0 0.0
    %301 = vmatprep.subr.mxu0 0.0
    %302 = vmatpush1.msra.mxu0 0.0
    %303 = vmatprep.subr.mxu0 0.0
    %304 = vmatpush1.msra.mxu0 0.0
    %305 = vmatprep.subr.mxu0 0.0
    %306 = vmatpush1.msra.mxu0 0.0
    %307 = vmatprep.subr.mxu0 0.0
    %308 = vmatpush1.msra.mxu0 0.0
    %309 = vmatprep.subr.mxu0 0.0
    %310 = vmatpush1.msra.mxu0 0.0
    %311 = vmatprep.mubr.f32.mxu0 0.0
    %312 = vmatmul.mubr.f32.gmra.mrb[0].mxu0 %v221
    %v313 = vpop.f32.mrb[0].mxu0
    %v314 = vadd.f32 %v245, %v313
    %v315 = vpop.f32.mrb[0].mxu0
    %316 = vdwg.mxu0
    %v317 = vtanh.pop %v314
    %s318 = scalar_lea.vmem [#allocation5], 384
    %v319 = vld [vmem:[%s318] sm:$0xff]
    %v320 = vld [vmem:[%s318 + $0x8] sm:$0xff]
    %v321 = vld [vmem:[%s318 + $0x10] sm:$0xff]
    %v322 = vld [vmem:[%s318 + $0x18] sm:$0xff]
    %v323 = vld [vmem:[%s318 + $0x20] sm:$0xff]
    %v324 = vld [vmem:[%s318 + $0x28] sm:$0xff]
    %v325 = vld [vmem:[%s318 + $0x30] sm:$0xff]
    %v326 = vld [vmem:[%s318 + $0x38] sm:$0xff]
    %v327 = vld [vmem:[%s318 + $0x40] sm:$0xff]
    %v328 = vld [vmem:[%s318 + $0x48] sm:$0xff]
    %v329 = vld [vmem:[%s318 + $0x50] sm:$0xff]
    %v330 = vld [vmem:[%s318 + $0x58] sm:$0xff]
    %v331 = vld [vmem:[%s318 + $0x60] sm:$0xff]
    %v332 = vld [vmem:[%s318 + $0x68] sm:$0xff]
    %v333 = vld [vmem:[%s318 + $0x70] sm:$0xff]
    %v334 = vld [vmem:[%s318 + $0x78] sm:$0xff]
    %s335 = scalar_lea.vmem %s2, 3
    %v336 = vld [vmem:[%s335] sm:$0x1]
    %v338 = vlaneseq
    %v339 = vshrl.u32 %v338, 7
    %v340 = vsub.s32 0, %v339
    %v341 = vrot.slane %v336, %v340
    %343 = vmatprep.subr.mxu0 0.0
    %344 = vmatpush1.msra.mxu0 %v319
    %345 = vmatprep.subr.mxu0 0.0
    %346 = vmatpush1.msra.mxu0 %v320
    %347 = vmatprep.subr.mxu0 0.0
    %348 = vmatpush1.msra.mxu0 %v321
    %349 = vmatprep.subr.mxu0 0.0
    %350 = vmatpush1.msra.mxu0 %v322
    %351 = vmatprep.subr.mxu0 0.0
    %352 = vmatpush1.msra.mxu0 %v323
    %353 = vmatprep.subr.mxu0 0.0
    %354 = vmatpush1.msra.mxu0 %v324
    %355 = vmatprep.subr.mxu0 0.0
    %356 = vmatpush1.msra.mxu0 %v325
    %357 = vmatprep.subr.mxu0 0.0
    %358 = vmatpush1.msra.mxu0 %v326
    %359 = vmatprep.subr.mxu0 0.0
    %360 = vmatpush1.msra.mxu0 %v327
    %361 = vmatprep.subr.mxu0 0.0
    %362 = vmatpush1.msra.mxu0 %v328
    %363 = vmatprep.subr.mxu0 0.0
    %364 = vmatpush1.msra.mxu0 %v329
    %365 = vmatprep.subr.mxu0 0.0
    %366 = vmatpush1.msra.mxu0 %v330
    %367 = vmatprep.subr.mxu0 0.0
    %368 = vmatpush1.msra.mxu0 %v331
    %369 = vmatprep.subr.mxu0 0.0
    %370 = vmatpush1.msra.mxu0 %v332
    %371 = vmatprep.subr.mxu0 0.0
    %372 = vmatpush1.msra.mxu0 %v333
    %373 = vmatprep.subr.mxu0 0.0
    %374 = vmatpush1.msra.mxu0 %v334
    %375 = vmatprep.subr.mxu0 0.0
    %376 = vmatpush1.msra.mxu0 0.0
    %377 = vmatprep.subr.mxu0 0.0
    %378 = vmatpush1.msra.mxu0 0.0
    %379 = vmatprep.subr.mxu0 0.0
    %380 = vmatpush1.msra.mxu0 0.0
    %381 = vmatprep.subr.mxu0 0.0
    %382 = vmatpush1.msra.mxu0 0.0
    %383 = vmatprep.subr.mxu0 0.0
    %384 = vmatpush1.msra.mxu0 0.0
    %385 = vmatprep.subr.mxu0 0.0
    %386 = vmatpush1.msra.mxu0 0.0
    %387 = vmatprep.subr.mxu0 0.0
    %388 = vmatpush1.msra.mxu0 0.0
    %389 = vmatprep.subr.mxu0 0.0
    %390 = vmatpush1.msra.mxu0 0.0
    %391 = vmatprep.subr.mxu0 0.0
    %392 = vmatpush1.msra.mxu0 0.0
    %393 = vmatprep.subr.mxu0 0.0
    %394 = vmatpush1.msra.mxu0 0.0
    %395 = vmatprep.subr.mxu0 0.0
    %396 = vmatpush1.msra.mxu0 0.0
    %397 = vmatprep.subr.mxu0 0.0
    %398 = vmatpush1.msra.mxu0 0.0
    %399 = vmatprep.subr.mxu0 0.0
    %400 = vmatpush1.msra.mxu0 0.0
    %401 = vmatprep.subr.mxu0 0.0
    %402 = vmatpush1.msra.mxu0 0.0
    %403 = vmatprep.subr.mxu0 0.0
    %404 = vmatpush1.msra.mxu0 0.0
    %405 = vmatprep.subr.mxu0 0.0
    %406 = vmatpush1.msra.mxu0 0.0
    %407 = vmatprep.mubr.f32.mxu0 0.0
    %408 = vmatmul.mubr.f32.gmra.mrb[0].mxu0 %v317
    %v409 = vpop.f32.mrb[0].mxu0
    %v410 = vadd.f32 %v341, %v409
    %v411 = vpop.f32.mrb[0].mxu0
    %412 = vdwg.mxu0
    %v413 = vtanh.pop %v410
    %s414 = scalar_lea.vmem [#allocation5], 512
    %v415 = vld [vmem:[%s414] sm:$0xff]
    %v416 = vld [vmem:[%s414 + $0x8] sm:$0xff]
    %v417 = vld [vmem:[%s414 + $0x10] sm:$0xff]
    %v418 = vld [vmem:[%s414 + $0x18] sm:$0xff]
    %v419 = vld [vmem:[%s414 + $0x20] sm:$0xff]
    %v420 = vld [vmem:[%s414 + $0x28] sm:$0xff]
    %v421 = vld [vmem:[%s414 + $0x30] sm:$0xff]
    %v422 = vld [vmem:[%s414 + $0x38] sm:$0xff]
    %v423 = vld [vmem:[%s414 + $0x40] sm:$0xff]
    %v424 = vld [vmem:[%s414 + $0x48] sm:$0xff]
    %v425 = vld [vmem:[%s414 + $0x50] sm:$0xff]
    %v426 = vld [vmem:[%s414 + $0x58] sm:$0xff]
    %v427 = vld [vmem:[%s414 + $0x60] sm:$0xff]
    %v428 = vld [vmem:[%s414 + $0x68] sm:$0xff]
    %v429 = vld [vmem:[%s414 + $0x70] sm:$0xff]
    %v430 = vld [vmem:[%s414 + $0x78] sm:$0xff]
    %s431 = scalar_lea.vmem %s2, 4
    %v432 = vld [vmem:[%s431] sm:$0x1]
    %v434 = vlaneseq
    %v435 = vshrl.u32 %v434, 7
    %v436 = vsub.s32 0, %v435
    %v437 = vrot.slane %v432, %v436
    %439 = vmatprep.subr.mxu0 0.0
    %440 = vmatpush1.msra.mxu0 %v415
    %441 = vmatprep.subr.mxu0 0.0
    %442 = vmatpush1.msra.mxu0 %v416
    %443 = vmatprep.subr.mxu0 0.0
    %444 = vmatpush1.msra.mxu0 %v417
    %445 = vmatprep.subr.mxu0 0.0
    %446 = vmatpush1.msra.mxu0 %v418
    %447 = vmatprep.subr.mxu0 0.0
    %448 = vmatpush1.msra.mxu0 %v419
    %449 = vmatprep.subr.mxu0 0.0
    %450 = vmatpush1.msra.mxu0 %v420
    %451 = vmatprep.subr.mxu0 0.0
    %452 = vmatpush1.msra.mxu0 %v421
    %453 = vmatprep.subr.mxu0 0.0
    %454 = vmatpush1.msra.mxu0 %v422
    %455 = vmatprep.subr.mxu0 0.0
    %456 = vmatpush1.msra.mxu0 %v423
    %457 = vmatprep.subr.mxu0 0.0
    %458 = vmatpush1.msra.mxu0 %v424
    %459 = vmatprep.subr.mxu0 0.0
    %460 = vmatpush1.msra.mxu0 %v425
    %461 = vmatprep.subr.mxu0 0.0
    %462 = vmatpush1.msra.mxu0 %v426
    %463 = vmatprep.subr.mxu0 0.0
    %464 = vmatpush1.msra.mxu0 %v427
    %465 = vmatprep.subr.mxu0 0.0
    %466 = vmatpush1.msra.mxu0 %v428
    %467 = vmatprep.subr.mxu0 0.0
    %468 = vmatpush1.msra.mxu0 %v429
    %469 = vmatprep.subr.mxu0 0.0
    %470 = vmatpush1.msra.mxu0 %v430
    %471 = vmatprep.subr.mxu0 0.0
    %472 = vmatpush1.msra.mxu0 0.0
    %473 = vmatprep.subr.mxu0 0.0
    %474 = vmatpush1.msra.mxu0 0.0
    %475 = vmatprep.subr.mxu0 0.0
    %476 = vmatpush1.msra.mxu0 0.0
    %477 = vmatprep.subr.mxu0 0.0
    %478 = vmatpush1.msra.mxu0 0.0
    %479 = vmatprep.subr.mxu0 0.0
    %480 = vmatpush1.msra.mxu0 0.0
    %481 = vmatprep.subr.mxu0 0.0
    %482 = vmatpush1.msra.mxu0 0.0
    %483 = vmatprep.subr.mxu0 0.0
    %484 = vmatpush1.msra.mxu0 0.0
    %485 = vmatprep.subr.mxu0 0.0
    %486 = vmatpush1.msra.mxu0 0.0
    %487 = vmatprep.subr.mxu0 0.0
    %488 = vmatpush1.msra.mxu0 0.0
    %489 = vmatprep.subr.mxu0 0.0
    %490 = vmatpush1.msra.mxu0 0.0
    %491 = vmatprep.subr.mxu0 0.0
    %492 = vmatpush1.msra.mxu0 0.0
    %493 = vmatprep.subr.mxu0 0.0
    %494 = vmatpush1.msra.mxu0 0.0
    %495 = vmatprep.subr.mxu0 0.0
    %496 = vmatpush1.msra.mxu0 0.0
    %497 = vmatprep.subr.mxu0 0.0
    %498 = vmatpush1.msra.mxu0 0.0
    %499 = vmatprep.subr.mxu0 0.0
    %500 = vmatpush1.msra.mxu0 0.0
    %501 = vmatprep.subr.mxu0 0.0
    %502 = vmatpush1.msra.mxu0 0.0
    %503 = vmatprep.mubr.f32.mxu0 0.0
    %504 = vmatmul.mubr.f32.gmra.mrb[0].mxu0 %v413
    %v505 = vpop.f32.mrb[0].mxu0
    %v506 = vadd.f32 %v437, %v505
    %v507 = vpop.f32.mrb[0].mxu0
    %508 = vdwg.mxu0
    %v509 = vtanh.pop %v506
    %v510 = vadd.f32 %v509, 1.0
    %511 = vst [vmem:[#allocation7] sm:$0xff] %v510
    // Predicated region
    $region22: #{tpu_custom_call.1} parent=1 // pred_check
      _
    $region23: #{tpu_custom_call.1} parent=1 // pred_check_branch
      %513 = sbr.rel (0) target = $region25
    $region24: #{tpu_custom_call.1} parent=1 // pred_region
      %s515 = ssub.s32 128, 128
      %516 = vsyncadd [#allocation4], %s515
      %s518 = sshll.u32 [#allocation7], 4
      %s519 = int_to_ptr.vmem [resolvable:$true] %s518
      %521 = dma.vmem_to_hbm [thread:$0]  %s519, 128, %s3, [#allocation4]
    $region25: #{tpu_custom_call.1} parent=1 // pred_fallthru
      _
    // Predicated region
    $region26: #{tpu_custom_call.1} parent=1 // pred_check
      _
    $region27: #{tpu_custom_call.1} parent=1 // pred_check_branch
      %523 = sbr.rel (0) target = $region29
    $region28: #{tpu_custom_call.1} parent=1 // pred_region
      %524 = dma.done [#allocation4], 128
    $region29: #{tpu_custom_call.1} parent=1 // pred_fallthru
      _
    %525 = vsyncpa [#allocation3], 1
    %526 = vsyncpa [#allocation6], 1
    %527 = vsyncpa [#allocation4], 1

</llo_original>
